<compile_context>
chip_gen: v7x
topology: tpu7x:2x2x1
jax: 0.10.0
libtpu: 0.0.40
codegen_flags: <defaults>
</compile_context>

<pallas_src>
import jax
import jax.numpy as jnp
from jax.experimental import pallas as pl
from jax.experimental.pallas import tpu as pltpu  # noqa: F401  (kept for TPU-specific extensions)


def lstm_linear_kernel(x_ref, wih_ref, whh_ref, b_ref, wlin_ref, blin_ref,
                       out_ref):
    S, H, O = wlin_ref.shape
    BP = out_ref.shape[0]          # sublane-padded batch

    # Hoisted weight loads: exactly one vld per weight tile.
    whh = whh_ref[...]             # (H, 4H)
    wlin = wlin_ref[...]           # (S, H, O)

    # Hoisted input projection: one (S*BP, I) @ (I, 4H) matmul, bias folded in.
    xg = (jnp.dot(x_ref[...], wih_ref[...],
                  preferred_element_type=jnp.float32)
          + b_ref[...])            # (S*BP, 4H)

    # Recurrent state and output accumulator held in vregs.
    h = jnp.zeros((BP, H), jnp.float32)
    c = jnp.zeros((BP, H), jnp.float32)
    out_acc = jnp.zeros((BP, O), jnp.float32)

    # S is small and static -> unrolled python loop.
    for t in range(S):
        gates = (xg[t * BP:(t + 1) * BP, :]
                 + jnp.dot(h, whh,
                           preferred_element_type=jnp.float32))   # (BP, 4H)

        # Full-slab nonlinearities (one vreg at H=32): 2 EUP passes/step.
        sig = jax.nn.sigmoid(gates)
        tnh = jnp.tanh(gates)

        # Gate order (reordered in wrapper): [i, f, o, g]
        i_g = sig[:, 0 * H:1 * H]
        f_g = sig[:, 1 * H:2 * H]
        o_g = sig[:, 2 * H:3 * H]
        g_g = tnh[:, 3 * H:4 * H]

        c = f_g * c + i_g * g_g
        h = o_g * jnp.tanh(c)

        # Output projection accumulated per step; off the h/c serial chain,
        # so it overlaps with the next step's EUP/VPU work.
        out_acc = out_acc + jnp.dot(h, wlin[t],
                                    preferred_element_type=jnp.float32)

    out_ref[...] = (out_acc + blin_ref[...]).astype(out_ref.dtype)


def _reorder_gates(w, H):
    """PyTorch LSTM gate order [i, f, g, o] -> kernel order [i, f, o, g]."""
    return jnp.concatenate([w[0:2 * H], w[3 * H:4 * H], w[2 * H:3 * H]],
                           axis=0)


def prepare_lstm_params(w_ih, w_hh, b_ih, b_hh, w_lin, b_lin):
    """One-time weight preprocessing (do this at parameter load, not per call).

    PyTorch layouts: w_ih (4H, I), w_hh (4H, H), b_ih/b_hh (4H,),
                     w_lin (O, S*H), b_lin (O,).
    """
    H = w_hh.shape[1]
    O = w_lin.shape[0]
    S = w_lin.shape[1] // H

    wih_t = jnp.transpose(_reorder_gates(w_ih, H))          # (I, 4H)
    whh_t = jnp.transpose(_reorder_gates(w_hh, H))          # (H, 4H)
    b = _reorder_gates(b_ih + b_hh, H).reshape(1, 4 * H)    # (1, 4H)
    wlin_sho = jnp.transpose(w_lin).reshape(S, H, O)        # (S, H, O)
    blin = b_lin.reshape(1, O)                              # (1, O)
    return wih_t, whh_t, b, wlin_sho, blin


@jax.jit
def lstm_forward(x, params):
    """x: (B, S, I); params from prepare_lstm_params()."""
    wih_t, whh_t, b, wlin_sho, blin = params
    B, S, I = x.shape
    H = whh_t.shape[0]
    O = blin.shape[1]

    # Pad batch to a full sublane group so per-step slices / MXU LHS are
    # (8, *)-aligned.  Padded rows never influence real rows (recurrence is
    # row-independent); they are sliced off below.
    BP = ((B + 7) // 8) * 8
    x_pad = jnp.pad(x, ((0, BP - B), (0, 0), (0, 0)))

    # Time-major flatten so the per-step slice is contiguous rows t*BP:(t+1)*BP.
    x_sb = jnp.transpose(x_pad, (1, 0, 2)).reshape(S * BP, I)   # (S*BP, I)

    out_pad = pl.pallas_call(
        lstm_linear_kernel,
        out_shape=jax.ShapeDtypeStruct((BP, O), jnp.float32),
    )(x_sb, wih_t, whh_t, b, wlin_sho, blin)

    return out_pad[:B]


def lstm_forward_ref(x, w_ih, w_hh, b_ih, b_hh, w_lin, b_lin):
    """Pure-JAX reference of the PyTorch forward (for verification)."""
    B, S, I = x.shape
    H = w_hh.shape[1]
    h = jnp.zeros((B, H), jnp.float32)
    c = jnp.zeros((B, H), jnp.float32)
    hs = []
    for t in range(S):
        gates = x[:, t, :] @ w_ih.T + b_ih + h @ w_hh.T + b_hh
        i = jax.nn.sigmoid(gates[:, 0 * H:1 * H])
        f = jax.nn.sigmoid(gates[:, 1 * H:2 * H])
        g = jnp.tanh(gates[:, 2 * H:3 * H])
        o = jax.nn.sigmoid(gates[:, 3 * H:4 * H])
        c = f * c + i * g
        h = o * jnp.tanh(c)
        hs.append(h)
    flat = jnp.concatenate(hs, axis=-1)          # (B, S*H)
    return flat @ w_lin.T + b_lin


if __name__ == "__main__":
    B, S, I, H, O = 2, 6, 8, 32, 4   # seq_l = 6 as in the PyTorch script

    key = jax.random.PRNGKey(0)
    ks = jax.random.split(key, 7)
    bound = 1.0 / jnp.sqrt(H)

    x = jax.random.normal(ks[0], (B, S, I), jnp.float32)
    w_ih = jax.random.uniform(ks[1], (4 * H, I), jnp.float32, -bound, bound)
    w_hh = jax.random.uniform(ks[2], (4 * H, H), jnp.float32, -bound, bound)
    b_ih = jax.random.uniform(ks[3], (4 * H,), jnp.float32, -bound, bound)
    b_hh = jax.random.uniform(ks[4], (4 * H,), jnp.float32, -bound, bound)
    w_lin = jax.random.uniform(ks[5], (O, S * H), jnp.float32, -bound, bound)
    b_lin = jax.random.uniform(ks[6], (O,), jnp.float32, -bound, bound)

    # One-time parameter preprocessing (hoisted out of the per-call path).
    params = prepare_lstm_params(w_ih, w_hh, b_ih, b_hh, w_lin, b_lin)
    params = jax.block_until_ready(params)

    out = lstm_forward(x, params)
    out = jax.block_until_ready(out)

    ref = lstm_forward_ref(x, w_ih, w_hh, b_ih, b_hh, w_lin, b_lin)
    assert out.shape == (B, O)
    assert jnp.allclose(out, ref, rtol=1e-4, atol=1e-4)

    print("KERNEL_OK")
</pallas_src>

<mosaic_0001>
module attributes {stable_mosaic.version = 11 : i64} {
  func.func @lstm_linear_kernel(%arg0: memref<48x8xf32, #tpu.memory_space<vmem>>, %arg1: memref<8x128xf32, #tpu.memory_space<vmem>>, %arg2: memref<32x128xf32, #tpu.memory_space<vmem>>, %arg3: memref<1x128xf32, #tpu.memory_space<vmem>>, %arg4: memref<6x32x4xf32, #tpu.memory_space<vmem>>, %arg5: memref<1x4xf32, #tpu.memory_space<vmem>>, %arg6: memref<8x4xf32, #tpu.memory_space<vmem>>) attributes {dimension_semantics = [], scalar_prefetch = 0 : i64, scratch_operands = 0 : i64, tpu.core_type = #tpu.core_type<tc>} {
    %c0 = arith.constant 0 : index
    %c0_0 = arith.constant 0 : index
    %0 = vector.load %arg2[%c0, %c0_0] : memref<32x128xf32, #tpu.memory_space<vmem>>, vector<32x128xf32>
    %c0_1 = arith.constant 0 : index
    %c0_2 = arith.constant 0 : index
    %c0_3 = arith.constant 0 : index
    %1 = vector.load %arg4[%c0_1, %c0_2, %c0_3] : memref<6x32x4xf32, #tpu.memory_space<vmem>>, vector<6x32x4xf32>
    %c0_4 = arith.constant 0 : index
    %c0_5 = arith.constant 0 : index
    %2 = vector.load %arg0[%c0_4, %c0_5] : memref<48x8xf32, #tpu.memory_space<vmem>>, vector<48x8xf32>
    %c0_6 = arith.constant 0 : index
    %c0_7 = arith.constant 0 : index
    %3 = vector.load %arg1[%c0_6, %c0_7] : memref<8x128xf32, #tpu.memory_space<vmem>>, vector<8x128xf32>
    %cst = arith.constant dense<0.000000e+00> : vector<48x128xf32>
    %4 = tpu.matmul %2, %3, %cst {dimension_numbers = #tpu.dot_dimension_numbers<[1], [0], [0], [1], [0, 0, 1, 1], [], []>} : vector<48x8xf32>, vector<8x128xf32>, vector<48x128xf32> -> vector<48x128xf32>
    %c0_8 = arith.constant 0 : index
    %c0_9 = arith.constant 0 : index
    %5 = vector.load %arg3[%c0_8, %c0_9] : memref<1x128xf32, #tpu.memory_space<vmem>>, vector<1x128xf32>
    %6 = vector.broadcast %5 : vector<1x128xf32> to vector<48x128xf32>
    %7 = arith.addf %4, %6 : vector<48x128xf32>
    %cst_10 = arith.constant 0.000000e+00 : f32
    %8 = vector.broadcast %cst_10 : f32 to vector<8x32xf32>
    %cst_11 = arith.constant 0.000000e+00 : f32
    %9 = vector.broadcast %cst_11 : f32 to vector<8x32xf32>
    %cst_12 = arith.constant 0.000000e+00 : f32
    %10 = vector.broadcast %cst_12 : f32 to vector<8x4xf32>
    %11 = vector.extract_strided_slice %7 {offsets = [0, 0], sizes = [8, 128], strides = [1, 1]} : vector<48x128xf32> to vector<8x128xf32>
    %cst_13 = arith.constant dense<0.000000e+00> : vector<8x128xf32>
    %12 = tpu.matmul %8, %0, %cst_13 {dimension_numbers = #tpu.dot_dimension_numbers<[1], [0], [0], [1], [0, 0, 1, 1], [], []>} : vector<8x32xf32>, vector<32x128xf32>, vector<8x128xf32> -> vector<8x128xf32>
    %13 = arith.addf %11, %12 : vector<8x128xf32>
    %14 = arith.negf %13 : vector<8x128xf32>
    %15 = math.exp %14 : vector<8x128xf32>
    %cst_14 = arith.constant 1.000000e+00 : f32
    %16 = vector.broadcast %cst_14 : f32 to vector<8x128xf32>
    %17 = arith.addf %16, %15 : vector<8x128xf32>
    %18 = arith.divf %16, %17 : vector<8x128xf32>
    %19 = math.tanh %13 : vector<8x128xf32>
    %20 = vector.extract_strided_slice %18 {offsets = [0, 0], sizes = [8, 32], strides = [1, 1]} : vector<8x128xf32> to vector<8x32xf32>
    %21 = vector.extract_strided_slice %18 {offsets = [0, 32], sizes = [8, 32], strides = [1, 1]} : vector<8x128xf32> to vector<8x32xf32>
    %22 = vector.extract_strided_slice %18 {offsets = [0, 64], sizes = [8, 32], strides = [1, 1]} : vector<8x128xf32> to vector<8x32xf32>
    %23 = vector.extract_strided_slice %19 {offsets = [0, 96], sizes = [8, 32], strides = [1, 1]} : vector<8x128xf32> to vector<8x32xf32>
    %24 = arith.mulf %21, %9 : vector<8x32xf32>
    %25 = arith.mulf %20, %23 : vector<8x32xf32>
    %26 = arith.addf %24, %25 : vector<8x32xf32>
    %27 = math.tanh %26 : vector<8x32xf32>
    %28 = arith.mulf %22, %27 : vector<8x32xf32>
    %29 = vector.extract_strided_slice %1 {offsets = [0, 0, 0], sizes = [1, 32, 4], strides = [1, 1, 1]} : vector<6x32x4xf32> to vector<1x32x4xf32>
    %30 = vector.shape_cast %29 : vector<1x32x4xf32> to vector<32x4xf32>
    %cst_15 = arith.constant dense<0.000000e+00> : vector<8x4xf32>
    %31 = tpu.matmul %28, %30, %cst_15 {dimension_numbers = #tpu.dot_dimension_numbers<[1], [0], [0], [1], [0, 0, 1, 1], [], []>} : vector<8x32xf32>, vector<32x4xf32>, vector<8x4xf32> -> vector<8x4xf32>
    %32 = arith.addf %10, %31 : vector<8x4xf32>
    %33 = vector.extract_strided_slice %7 {offsets = [8, 0], sizes = [8, 128], strides = [1, 1]} : vector<48x128xf32> to vector<8x128xf32>
    %cst_16 = arith.constant dense<0.000000e+00> : vector<8x128xf32>
    %34 = tpu.matmul %28, %0, %cst_16 {dimension_numbers = #tpu.dot_dimension_numbers<[1], [0], [0], [1], [0, 0, 1, 1], [], []>} : vector<8x32xf32>, vector<32x128xf32>, vector<8x128xf32> -> vector<8x128xf32>
    %35 = arith.addf %33, %34 : vector<8x128xf32>
    %36 = arith.negf %35 : vector<8x128xf32>
    %37 = math.exp %36 : vector<8x128xf32>
    %cst_17 = arith.constant 1.000000e+00 : f32
    %38 = vector.broadcast %cst_17 : f32 to vector<8x128xf32>
    %39 = arith.addf %38, %37 : vector<8x128xf32>
    %40 = arith.divf %38, %39 : vector<8x128xf32>
    %41 = math.tanh %35 : vector<8x128xf32>
    %42 = vector.extract_strided_slice %40 {offsets = [0, 0], sizes = [8, 32], strides = [1, 1]} : vector<8x128xf32> to vector<8x32xf32>
    %43 = vector.extract_strided_slice %40 {offsets = [0, 32], sizes = [8, 32], strides = [1, 1]} : vector<8x128xf32> to vector<8x32xf32>
    %44 = vector.extract_strided_slice %40 {offsets = [0, 64], sizes = [8, 32], strides = [1, 1]} : vector<8x128xf32> to vector<8x32xf32>
    %45 = vector.extract_strided_slice %41 {offsets = [0, 96], sizes = [8, 32], strides = [1, 1]} : vector<8x128xf32> to vector<8x32xf32>
    %46 = arith.mulf %43, %26 : vector<8x32xf32>
    %47 = arith.mulf %42, %45 : vector<8x32xf32>
    %48 = arith.addf %46, %47 : vector<8x32xf32>
    %49 = math.tanh %48 : vector<8x32xf32>
    %50 = arith.mulf %44, %49 : vector<8x32xf32>
    %51 = vector.extract_strided_slice %1 {offsets = [1, 0, 0], sizes = [1, 32, 4], strides = [1, 1, 1]} : vector<6x32x4xf32> to vector<1x32x4xf32>
    %52 = vector.shape_cast %51 : vector<1x32x4xf32> to vector<32x4xf32>
    %cst_18 = arith.constant dense<0.000000e+00> : vector<8x4xf32>
    %53 = tpu.matmul %50, %52, %cst_18 {dimension_numbers = #tpu.dot_dimension_numbers<[1], [0], [0], [1], [0, 0, 1, 1], [], []>} : vector<8x32xf32>, vector<32x4xf32>, vector<8x4xf32> -> vector<8x4xf32>
    %54 = arith.addf %32, %53 : vector<8x4xf32>
    %55 = vector.extract_strided_slice %7 {offsets = [16, 0], sizes = [8, 128], strides = [1, 1]} : vector<48x128xf32> to vector<8x128xf32>
    %cst_19 = arith.constant dense<0.000000e+00> : vector<8x128xf32>
    %56 = tpu.matmul %50, %0, %cst_19 {dimension_numbers = #tpu.dot_dimension_numbers<[1], [0], [0], [1], [0, 0, 1, 1], [], []>} : vector<8x32xf32>, vector<32x128xf32>, vector<8x128xf32> -> vector<8x128xf32>
    %57 = arith.addf %55, %56 : vector<8x128xf32>
    %58 = arith.negf %57 : vector<8x128xf32>
    %59 = math.exp %58 : vector<8x128xf32>
    %cst_20 = arith.constant 1.000000e+00 : f32
    %60 = vector.broadcast %cst_20 : f32 to vector<8x128xf32>
    %61 = arith.addf %60, %59 : vector<8x128xf32>
    %62 = arith.divf %60, %61 : vector<8x128xf32>
    %63 = math.tanh %57 : vector<8x128xf32>
    %64 = vector.extract_strided_slice %62 {offsets = [0, 0], sizes = [8, 32], strides = [1, 1]} : vector<8x128xf32> to vector<8x32xf32>
    %65 = vector.extract_strided_slice %62 {offsets = [0, 32], sizes = [8, 32], strides = [1, 1]} : vector<8x128xf32> to vector<8x32xf32>
    %66 = vector.extract_strided_slice %62 {offsets = [0, 64], sizes = [8, 32], strides = [1, 1]} : vector<8x128xf32> to vector<8x32xf32>
    %67 = vector.extract_strided_slice %63 {offsets = [0, 96], sizes = [8, 32], strides = [1, 1]} : vector<8x128xf32> to vector<8x32xf32>
    %68 = arith.mulf %65, %48 : vector<8x32xf32>
    %69 = arith.mulf %64, %67 : vector<8x32xf32>
    %70 = arith.addf %68, %69 : vector<8x32xf32>
    %71 = math.tanh %70 : vector<8x32xf32>
    %72 = arith.mulf %66, %71 : vector<8x32xf32>
    %73 = vector.extract_strided_slice %1 {offsets = [2, 0, 0], sizes = [1, 32, 4], strides = [1, 1, 1]} : vector<6x32x4xf32> to vector<1x32x4xf32>
    %74 = vector.shape_cast %73 : vector<1x32x4xf32> to vector<32x4xf32>
    %cst_21 = arith.constant dense<0.000000e+00> : vector<8x4xf32>
    %75 = tpu.matmul %72, %74, %cst_21 {dimension_numbers = #tpu.dot_dimension_numbers<[1], [0], [0], [1], [0, 0, 1, 1], [], []>} : vector<8x32xf32>, vector<32x4xf32>, vector<8x4xf32> -> vector<8x4xf32>
    %76 = arith.addf %54, %75 : vector<8x4xf32>
    %77 = vector.extract_strided_slice %7 {offsets = [24, 0], sizes = [8, 128], strides = [1, 1]} : vector<48x128xf32> to vector<8x128xf32>
    %cst_22 = arith.constant dense<0.000000e+00> : vector<8x128xf32>
    %78 = tpu.matmul %72, %0, %cst_22 {dimension_numbers = #tpu.dot_dimension_numbers<[1], [0], [0], [1], [0, 0, 1, 1], [], []>} : vector<8x32xf32>, vector<32x128xf32>, vector<8x128xf32> -> vector<8x128xf32>
    %79 = arith.addf %77, %78 : vector<8x128xf32>
    %80 = arith.negf %79 : vector<8x128xf32>
    %81 = math.exp %80 : vector<8x128xf32>
    %cst_23 = arith.constant 1.000000e+00 : f32
    %82 = vector.broadcast %cst_23 : f32 to vector<8x128xf32>
    %83 = arith.addf %82, %81 : vector<8x128xf32>
    %84 = arith.divf %82, %83 : vector<8x128xf32>
    %85 = math.tanh %79 : vector<8x128xf32>
    %86 = vector.extract_strided_slice %84 {offsets = [0, 0], sizes = [8, 32], strides = [1, 1]} : vector<8x128xf32> to vector<8x32xf32>
    %87 = vector.extract_strided_slice %84 {offsets = [0, 32], sizes = [8, 32], strides = [1, 1]} : vector<8x128xf32> to vector<8x32xf32>
    %88 = vector.extract_strided_slice %84 {offsets = [0, 64], sizes = [8, 32], strides = [1, 1]} : vector<8x128xf32> to vector<8x32xf32>
    %89 = vector.extract_strided_slice %85 {offsets = [0, 96], sizes = [8, 32], strides = [1, 1]} : vector<8x128xf32> to vector<8x32xf32>
    %90 = arith.mulf %87, %70 : vector<8x32xf32>
    %91 = arith.mulf %86, %89 : vector<8x32xf32>
    %92 = arith.addf %90, %91 : vector<8x32xf32>
    %93 = math.tanh %92 : vector<8x32xf32>
    %94 = arith.mulf %88, %93 : vector<8x32xf32>
    %95 = vector.extract_strided_slice %1 {offsets = [3, 0, 0], sizes = [1, 32, 4], strides = [1, 1, 1]} : vector<6x32x4xf32> to vector<1x32x4xf32>
    %96 = vector.shape_cast %95 : vector<1x32x4xf32> to vector<32x4xf32>
    %cst_24 = arith.constant dense<0.000000e+00> : vector<8x4xf32>
    %97 = tpu.matmul %94, %96, %cst_24 {dimension_numbers = #tpu.dot_dimension_numbers<[1], [0], [0], [1], [0, 0, 1, 1], [], []>} : vector<8x32xf32>, vector<32x4xf32>, vector<8x4xf32> -> vector<8x4xf32>
    %98 = arith.addf %76, %97 : vector<8x4xf32>
    %99 = vector.extract_strided_slice %7 {offsets = [32, 0], sizes = [8, 128], strides = [1, 1]} : vector<48x128xf32> to vector<8x128xf32>
    %cst_25 = arith.constant dense<0.000000e+00> : vector<8x128xf32>
    %100 = tpu.matmul %94, %0, %cst_25 {dimension_numbers = #tpu.dot_dimension_numbers<[1], [0], [0], [1], [0, 0, 1, 1], [], []>} : vector<8x32xf32>, vector<32x128xf32>, vector<8x128xf32> -> vector<8x128xf32>
    %101 = arith.addf %99, %100 : vector<8x128xf32>
    %102 = arith.negf %101 : vector<8x128xf32>
    %103 = math.exp %102 : vector<8x128xf32>
    %cst_26 = arith.constant 1.000000e+00 : f32
    %104 = vector.broadcast %cst_26 : f32 to vector<8x128xf32>
    %105 = arith.addf %104, %103 : vector<8x128xf32>
    %106 = arith.divf %104, %105 : vector<8x128xf32>
    %107 = math.tanh %101 : vector<8x128xf32>
    %108 = vector.extract_strided_slice %106 {offsets = [0, 0], sizes = [8, 32], strides = [1, 1]} : vector<8x128xf32> to vector<8x32xf32>
    %109 = vector.extract_strided_slice %106 {offsets = [0, 32], sizes = [8, 32], strides = [1, 1]} : vector<8x128xf32> to vector<8x32xf32>
    %110 = vector.extract_strided_slice %106 {offsets = [0, 64], sizes = [8, 32], strides = [1, 1]} : vector<8x128xf32> to vector<8x32xf32>
    %111 = vector.extract_strided_slice %107 {offsets = [0, 96], sizes = [8, 32], strides = [1, 1]} : vector<8x128xf32> to vector<8x32xf32>
    %112 = arith.mulf %109, %92 : vector<8x32xf32>
    %113 = arith.mulf %108, %111 : vector<8x32xf32>
    %114 = arith.addf %112, %113 : vector<8x32xf32>
    %115 = math.tanh %114 : vector<8x32xf32>
    %116 = arith.mulf %110, %115 : vector<8x32xf32>
    %117 = vector.extract_strided_slice %1 {offsets = [4, 0, 0], sizes = [1, 32, 4], strides = [1, 1, 1]} : vector<6x32x4xf32> to vector<1x32x4xf32>
    %118 = vector.shape_cast %117 : vector<1x32x4xf32> to vector<32x4xf32>
    %cst_27 = arith.constant dense<0.000000e+00> : vector<8x4xf32>
    %119 = tpu.matmul %116, %118, %cst_27 {dimension_numbers = #tpu.dot_dimension_numbers<[1], [0], [0], [1], [0, 0, 1, 1], [], []>} : vector<8x32xf32>, vector<32x4xf32>, vector<8x4xf32> -> vector<8x4xf32>
    %120 = arith.addf %98, %119 : vector<8x4xf32>
    %121 = vector.extract_strided_slice %7 {offsets = [40, 0], sizes = [8, 128], strides = [1, 1]} : vector<48x128xf32> to vector<8x128xf32>
    %cst_28 = arith.constant dense<0.000000e+00> : vector<8x128xf32>
    %122 = tpu.matmul %116, %0, %cst_28 {dimension_numbers = #tpu.dot_dimension_numbers<[1], [0], [0], [1], [0, 0, 1, 1], [], []>} : vector<8x32xf32>, vector<32x128xf32>, vector<8x128xf32> -> vector<8x128xf32>
    %123 = arith.addf %121, %122 : vector<8x128xf32>
    %124 = arith.negf %123 : vector<8x128xf32>
    %125 = math.exp %124 : vector<8x128xf32>
    %cst_29 = arith.constant 1.000000e+00 : f32
    %126 = vector.broadcast %cst_29 : f32 to vector<8x128xf32>
    %127 = arith.addf %126, %125 : vector<8x128xf32>
    %128 = arith.divf %126, %127 : vector<8x128xf32>
    %129 = math.tanh %123 : vector<8x128xf32>
    %130 = vector.extract_strided_slice %128 {offsets = [0, 0], sizes = [8, 32], strides = [1, 1]} : vector<8x128xf32> to vector<8x32xf32>
    %131 = vector.extract_strided_slice %128 {offsets = [0, 32], sizes = [8, 32], strides = [1, 1]} : vector<8x128xf32> to vector<8x32xf32>
    %132 = vector.extract_strided_slice %128 {offsets = [0, 64], sizes = [8, 32], strides = [1, 1]} : vector<8x128xf32> to vector<8x32xf32>
    %133 = vector.extract_strided_slice %129 {offsets = [0, 96], sizes = [8, 32], strides = [1, 1]} : vector<8x128xf32> to vector<8x32xf32>
    %134 = arith.mulf %131, %114 : vector<8x32xf32>
    %135 = arith.mulf %130, %133 : vector<8x32xf32>
    %136 = arith.addf %134, %135 : vector<8x32xf32>
    %137 = math.tanh %136 : vector<8x32xf32>
    %138 = arith.mulf %132, %137 : vector<8x32xf32>
    %139 = vector.extract_strided_slice %1 {offsets = [5, 0, 0], sizes = [1, 32, 4], strides = [1, 1, 1]} : vector<6x32x4xf32> to vector<1x32x4xf32>
    %140 = vector.shape_cast %139 : vector<1x32x4xf32> to vector<32x4xf32>
    %cst_30 = arith.constant dense<0.000000e+00> : vector<8x4xf32>
    %141 = tpu.matmul %138, %140, %cst_30 {dimension_numbers = #tpu.dot_dimension_numbers<[1], [0], [0], [1], [0, 0, 1, 1], [], []>} : vector<8x32xf32>, vector<32x4xf32>, vector<8x4xf32> -> vector<8x4xf32>
    %142 = arith.addf %120, %141 : vector<8x4xf32>
    %c0_31 = arith.constant 0 : index
    %c0_32 = arith.constant 0 : index
    %143 = vector.load %arg5[%c0_31, %c0_32] : memref<1x4xf32, #tpu.memory_space<vmem>>, vector<1x4xf32>
    %144 = vector.broadcast %143 : vector<1x4xf32> to vector<8x4xf32>
    %145 = arith.addf %142, %144 : vector<8x4xf32>
    %c0_33 = arith.constant 0 : index
    %c0_34 = arith.constant 0 : index
    %146 = vector.load %arg6[%c0_33, %c0_34] : memref<8x4xf32, #tpu.memory_space<vmem>>, vector<8x4xf32>
    tpu.vector_store %arg6[%c0_33, %c0_34], %145 {strides = array<i32>} : memref<8x4xf32, #tpu.memory_space<vmem>>, vector<8x4xf32>,
    return
  }
}

</mosaic_0001>

<llo_original>
// kernel: lstm_forward.1
$region0: #{lstm_forward.1}
  #allocation0 [shape = 'u32[]', space=smem, size = 0x4, offset = 0x4, fixed_abs, tag = 'smem constant byte address 0x4 - core index']
  #allocation1 [shape = 'u32[144,128]{1,0:T(1,128)}', space=vmem, size = 0x12000, scoped, tag = 'internal scratch']
  %s0 = inlined_call_operand.vmem [shape: f32[48,8], index: 0, kind: input, shape index: {}]
  %s1 = inlined_call_operand.vmem [shape: f32[8,128], index: 1, kind: input, shape index: {}]
  %s2 = inlined_call_operand.vmem [shape: f32[32,128], index: 2, kind: input, shape index: {}]
  %s3 = inlined_call_operand.vmem [shape: f32[1,128], index: 3, kind: input, shape index: {}]
  %s4 = inlined_call_operand.vmem [shape: f32[6,32,4], index: 4, kind: input, shape index: {}]
  %s5 = inlined_call_operand.vmem [shape: f32[1,4], index: 5, kind: input, shape index: {}]
  %s6 = inlined_call_operand.vmem [shape: f32[8,4], index: 6, kind: output, shape index: {}]
  %s7 = sld [smem:[#allocation0]]
  $region34: #{lstm_forward.1} parent=0
    _
  %s9 = ssub.s32 1, %s7
  %s10 = scalar_select 0, %s9, %s7
  // Predicated region
  $region2: #{lstm_forward.1} parent=0 // pred_check
    _
  $region3: #{lstm_forward.1} parent=0 // pred_check_branch
    %12 = sbr.rel (0) target = $region5
  $region4: #{lstm_forward.1} parent=0 // pred_region
    _
  $region5: #{lstm_forward.1} parent=0 // pred_fallthru
    _
  // Predicated region
  $region6: #{lstm_forward.1} parent=0 // pred_check
    _
  $region7: #{lstm_forward.1} parent=0 // pred_check_branch
    %14 = sbr.rel (0) target = $region9
  $region8: #{lstm_forward.1} parent=0 // pred_region
    _
  $region9: #{lstm_forward.1} parent=0 // pred_fallthru
    _
  // Predicated region
  $region10: #{lstm_forward.1} parent=0 // pred_check
    _
  $region11: #{lstm_forward.1} parent=0 // pred_check_branch
    %16 = sbr.rel (0) target = $region13
  $region12: #{lstm_forward.1} parent=0 // pred_region
    _
  $region13: #{lstm_forward.1} parent=0 // pred_fallthru
    _
  // Predicated region
  $region14: #{lstm_forward.1} parent=0 // pred_check
    _
  $region15: #{lstm_forward.1} parent=0 // pred_check_branch
    %18 = sbr.rel (0) target = $region17
  $region16: #{lstm_forward.1} parent=0 // pred_region
    _
  $region17: #{lstm_forward.1} parent=0 // pred_fallthru
    _
  // Predicated region
  $region18: #{lstm_forward.1} parent=0 // pred_check
    _
  $region19: #{lstm_forward.1} parent=0 // pred_check_branch
    %20 = sbr.rel (0) target = $region21
  $region20: #{lstm_forward.1} parent=0 // pred_region
    _
  $region21: #{lstm_forward.1} parent=0 // pred_fallthru
    _
  // Predicated region
  $region22: #{lstm_forward.1} parent=0 // pred_check
    _
  $region23: #{lstm_forward.1} parent=0 // pred_check_branch
    %22 = sbr.rel (0) target = $region25
  $region24: #{lstm_forward.1} parent=0 // pred_region
    _
  $region25: #{lstm_forward.1} parent=0 // pred_fallthru
    _
  %v23 = vld [vmem:[%s2] sm:$0xff]
  %v24 = vld [vmem:[%s2 + $0x8] sm:$0xff]
  %v25 = vld [vmem:[%s2 + $0x10] sm:$0xff]
  %v26 = vld [vmem:[%s2 + $0x18] sm:$0xff]
  %v27 = vld [vmem:[%s4] sm:$0xff]
  %v28 = vld [vmem:[%s4 + $0x8] sm:$0xff]
  %v29 = vld [vmem:[%s4 + $0x10] sm:$0xff]
  %v30 = vld [vmem:[%s4 + $0x18] sm:$0xff]
  %v31 = vld [vmem:[%s4 + $0x20] sm:$0xff]
  %v32 = vld [vmem:[%s4 + $0x28] sm:$0xff]
  %v33 = vld [vmem:[%s4 + $0x30] sm:$0xff]
  %v34 = vld [vmem:[%s4 + $0x38] sm:$0xff]
  %v35 = vld [vmem:[%s4 + $0x40] sm:$0xff]
  %v36 = vld [vmem:[%s4 + $0x48] sm:$0xff]
  %v37 = vld [vmem:[%s4 + $0x50] sm:$0xff]
  %v38 = vld [vmem:[%s4 + $0x58] sm:$0xff]
  %v39 = vld [vmem:[%s4 + $0x60] sm:$0xff]
  %v40 = vld [vmem:[%s4 + $0x68] sm:$0xff]
  %v41 = vld [vmem:[%s4 + $0x70] sm:$0xff]
  %v42 = vld [vmem:[%s4 + $0x78] sm:$0xff]
  %v43 = vld [vmem:[%s4 + $0x80] sm:$0xff]
  %v44 = vld [vmem:[%s4 + $0x88] sm:$0xff]
  %v45 = vld [vmem:[%s4 + $0x90] sm:$0xff]
  %v46 = vld [vmem:[%s4 + $0x98] sm:$0xff]
  %v47 = vld [vmem:[%s4 + $0xa0] sm:$0xff]
  %v48 = vld [vmem:[%s4 + $0xa8] sm:$0xff]
  %v49 = vld [vmem:[%s4 + $0xb0] sm:$0xff]
  %v50 = vld [vmem:[%s4 + $0xb8] sm:$0xff]
  %v51 = vld [vmem:[%s0] sm:$0xff]
  %v52 = vld [vmem:[%s0 + $0x8] sm:$0xff]
  %v53 = vld [vmem:[%s0 + $0x10] sm:$0xff]
  %v54 = vld [vmem:[%s0 + $0x18] sm:$0xff]
  %v55 = vld [vmem:[%s0 + $0x20] sm:$0xff]
  %v56 = vld [vmem:[%s0 + $0x28] sm:$0xff]
  %v57 = vld [vmem:[%s1] sm:$0xff]
  %v58 = vld [vmem:[%s3] sm:$0x1]
  %v60 = vlaneseq
  %v61 = vshrl.u32 %v60, 7
  %v62 = vsub.s32 0, %v61
  %v63 = vrot.slane %v58, %v62
  %vm65 = vcmask 64512
  %v67 = vsel %vm65, %v51, 0
  %v70 = vsel %vm65, %v52, 0
  %v73 = vsel %vm65, %v53, 0
  %v76 = vsel %vm65, %v54, 0
  %v79 = vsel %vm65, %v55, 0
  %v82 = vsel %vm65, %v56, 0
  %84 = vmatprep.subr.mxu0 0.0
  %85 = vmatpush1.msra.mxu0 %v57
  %86 = vmatprep.subr.mxu0 0.0
  %87 = vmatpush1.msra.mxu0 0.0
  %88 = vmatprep.subr.mxu0 0.0
  %89 = vmatpush1.msra.mxu0 0.0
  %90 = vmatprep.subr.mxu0 0.0
  %91 = vmatpush1.msra.mxu0 0.0
  %92 = vmatprep.subr.mxu0 0.0
  %93 = vmatpush1.msra.mxu0 0.0
  %94 = vmatprep.subr.mxu0 0.0
  %95 = vmatpush1.msra.mxu0 0.0
  %96 = vmatprep.subr.mxu0 0.0
  %97 = vmatpush1.msra.mxu0 0.0
  %98 = vmatprep.subr.mxu0 0.0
  %99 = vmatpush1.msra.mxu0 0.0
  %100 = vmatprep.subr.mxu0 0.0
  %101 = vmatpush1.msra.mxu0 0.0
  %102 = vmatprep.subr.mxu0 0.0
  %103 = vmatpush1.msra.mxu0 0.0
  %104 = vmatprep.subr.mxu0 0.0
  %105 = vmatpush1.msra.mxu0 0.0
  %106 = vmatprep.subr.mxu0 0.0
  %107 = vmatpush1.msra.mxu0 0.0
  %108 = vmatprep.subr.mxu0 0.0
  %109 = vmatpush1.msra.mxu0 0.0
  %110 = vmatprep.subr.mxu0 0.0
  %111 = vmatpush1.msra.mxu0 0.0
  %112 = vmatprep.subr.mxu0 0.0
  %113 = vmatpush1.msra.mxu0 0.0
  %114 = vmatprep.subr.mxu0 0.0
  %115 = vmatpush1.msra.mxu0 0.0
  %116 = vmatprep.subr.mxu0 0.0
  %117 = vmatpush1.msra.mxu0 0.0
  %118 = vmatprep.subr.mxu0 0.0
  %119 = vmatpush1.msra.mxu0 0.0
  %120 = vmatprep.subr.mxu0 0.0
  %121 = vmatpush1.msra.mxu0 0.0
  %122 = vmatprep.subr.mxu0 0.0
  %123 = vmatpush1.msra.mxu0 0.0
  %124 = vmatprep.subr.mxu0 0.0
  %125 = vmatpush1.msra.mxu0 0.0
  %126 = vmatprep.subr.mxu0 0.0
  %127 = vmatpush1.msra.mxu0 0.0
  %128 = vmatprep.subr.mxu0 0.0
  %129 = vmatpush1.msra.mxu0 0.0
  %130 = vmatprep.subr.mxu0 0.0
  %131 = vmatpush1.msra.mxu0 0.0
  %132 = vmatprep.subr.mxu0 0.0
  %133 = vmatpush1.msra.mxu0 0.0
  %134 = vmatprep.subr.mxu0 0.0
  %135 = vmatpush1.msra.mxu0 0.0
  %136 = vmatprep.subr.mxu0 0.0
  %137 = vmatpush1.msra.mxu0 0.0
  %138 = vmatprep.subr.mxu0 0.0
  %139 = vmatpush1.msra.mxu0 0.0
  %140 = vmatprep.subr.mxu0 0.0
  %141 = vmatpush1.msra.mxu0 0.0
  %142 = vmatprep.subr.mxu0 0.0
  %143 = vmatpush1.msra.mxu0 0.0
  %144 = vmatprep.subr.mxu0 0.0
  %145 = vmatpush1.msra.mxu0 0.0
  %146 = vmatprep.subr.mxu0 0.0
  %147 = vmatpush1.msra.mxu0 0.0
  %148 = vmatprep.mubr.f32.mxu0 0.0
  %149 = vmatmul.mubr.f32.gmra.mrb[0].mxu0 %v67
  %v150 = vpop.f32.mrb[0].mxu0
  %v151 = vadd.f32 %v63, %v150
  %v152 = vpop.f32.mrb[0].mxu0
  %153 = vmatprep.mubr.f32.mxu0 0.0
  %154 = vmatmul.mubr.f32.gmra.mrb[0].mxu0 %v70
  %v155 = vpop.f32.mrb[0].mxu0
  %v156 = vadd.f32 %v63, %v155
  %v157 = vpop.f32.mrb[0].mxu0
  %158 = vmatprep.mubr.f32.mxu0 0.0
  %159 = vmatmul.mubr.f32.gmra.mrb[0].mxu0 %v73
  %v160 = vpop.f32.mrb[0].mxu0
  %v161 = vadd.f32 %v63, %v160
  %v162 = vpop.f32.mrb[0].mxu0
  %163 = vmatprep.mubr.f32.mxu0 0.0
  %164 = vmatmul.mubr.f32.gmra.mrb[0].mxu0 %v76
  %v165 = vpop.f32.mrb[0].mxu0
  %v166 = vadd.f32 %v63, %v165
  %v167 = vpop.f32.mrb[0].mxu0
  %168 = vmatprep.mubr.f32.mxu0 0.0
  %169 = vmatmul.mubr.f32.gmra.mrb[0].mxu0 %v79
  %v170 = vpop.f32.mrb[0].mxu0
  %v171 = vadd.f32 %v63, %v170
  %v172 = vpop.f32.mrb[0].mxu0
  %173 = vmatprep.mubr.f32.mxu0 0.0
  %174 = vmatmul.mubr.f32.gmra.mrb[0].mxu0 %v82
  %v175 = vpop.f32.mrb[0].mxu0
  %v176 = vadd.f32 %v63, %v175
  %v177 = vpop.f32.mrb[0].mxu0
  %178 = vdwg.mxu0
  %vm179 = vcmask 261120
  %v181 = vsel %vm179, 0.0, 0
  %183 = vmatprep.subr.mxu0 0.0
  %184 = vmatpush1.msra.mxu0 %v23
  %185 = vmatprep.subr.mxu0 0.0
  %186 = vmatpush1.msra.mxu0 %v24
  %187 = vmatprep.subr.mxu0 0.0
  %188 = vmatpush1.msra.mxu0 %v25
  %189 = vmatprep.subr.mxu0 0.0
  %190 = vmatpush1.msra.mxu0 %v26
  %191 = vmatprep.subr.mxu0 0.0
  %192 = vmatpush1.msra.mxu0 0.0
  %193 = vmatprep.subr.mxu0 0.0
  %194 = vmatpush1.msra.mxu0 0.0
  %195 = vmatprep.subr.mxu0 0.0
  %196 = vmatpush1.msra.mxu0 0.0
  %197 = vmatprep.subr.mxu0 0.0
  %198 = vmatpush1.msra.mxu0 0.0
  %199 = vmatprep.subr.mxu0 0.0
  %200 = vmatpush1.msra.mxu0 0.0
  %201 = vmatprep.subr.mxu0 0.0
  %202 = vmatpush1.msra.mxu0 0.0
  %203 = vmatprep.subr.mxu0 0.0
  %204 = vmatpush1.msra.mxu0 0.0
  %205 = vmatprep.subr.mxu0 0.0
  %206 = vmatpush1.msra.mxu0 0.0
  %207 = vmatprep.subr.mxu0 0.0
  %208 = vmatpush1.msra.mxu0 0.0
  %209 = vmatprep.subr.mxu0 0.0
  %210 = vmatpush1.msra.mxu0 0.0
  %211 = vmatprep.subr.mxu0 0.0
  %212 = vmatpush1.msra.mxu0 0.0
  %213 = vmatprep.subr.mxu0 0.0
  %214 = vmatpush1.msra.mxu0 0.0
  %215 = vmatprep.subr.mxu0 0.0
  %216 = vmatpush1.msra.mxu0 0.0
  %217 = vmatprep.subr.mxu0 0.0
  %218 = vmatpush1.msra.mxu0 0.0
  %219 = vmatprep.subr.mxu0 0.0
  %220 = vmatpush1.msra.mxu0 0.0
  %221 = vmatprep.subr.mxu0 0.0
  %222 = vmatpush1.msra.mxu0 0.0
  %223 = vmatprep.subr.mxu0 0.0
  %224 = vmatpush1.msra.mxu0 0.0
  %225 = vmatprep.subr.mxu0 0.0
  %226 = vmatpush1.msra.mxu0 0.0
  %227 = vmatprep.subr.mxu0 0.0
  %228 = vmatpush1.msra.mxu0 0.0
  %229 = vmatprep.subr.mxu0 0.0
  %230 = vmatpush1.msra.mxu0 0.0
  %231 = vmatprep.subr.mxu0 0.0
  %232 = vmatpush1.msra.mxu0 0.0
  %233 = vmatprep.subr.mxu0 0.0
  %234 = vmatpush1.msra.mxu0 0.0
  %235 = vmatprep.subr.mxu0 0.0
  %236 = vmatpush1.msra.mxu0 0.0
  %237 = vmatprep.subr.mxu0 0.0
  %238 = vmatpush1.msra.mxu0 0.0
  %239 = vmatprep.subr.mxu0 0.0
  %240 = vmatpush1.msra.mxu0 0.0
  %241 = vmatprep.subr.mxu0 0.0
  %242 = vmatpush1.msra.mxu0 0.0
  %243 = vmatprep.subr.mxu0 0.0
  %244 = vmatpush1.msra.mxu0 0.0
  %245 = vmatprep.subr.mxu0 0.0
  %246 = vmatpush1.msra.mxu0 0.0
  %247 = vmatprep.mubr.f32.mxu0 0.0
  %248 = vmatmul.mubr.f32.gmra.mrb[0].mxu0 %v181
  %v249 = vpop.f32.mrb[0].mxu0
  %v250 = vadd.f32 0.0, %v249
  %v251 = vpop.f32.mrb[0].mxu0
  %252 = vdwg.mxu0
  %v253 = vadd.f32 %v151, %v250
  %v254 = vxor.u32 %v253, 2147483648
  %v255 = vmul.f32 %v254, 1.442695
  %v256 = vpow.pop %v255
  %v257 = vadd.f32 %v256, 1.0
  %v258 = vrcp.pop %v257
  %v259 = vmul.f32 1.0, %v258
  %v260 = vtanh.pop %v253
  %v261 = vmul.f32 %v259, 0.0
  %263 = vrot.lane.b32.xlu0 %v260, 32
  %v264 = vpop.permute.xlu0 %263
  %v266 = vmul.f32 %v259, %v264
  %268 = vrot.lane.b32.xlu0 %v266, 32
  %v269 = vpop.permute.xlu0 %268
  %v271 = vadd.f32 %v261, %v269
  %v272 = vtanh.pop %v271
  %274 = vrot.lane.b32.xlu0 %v272, 32
  %v275 = vpop.permute.xlu0 %274
  %v277 = vmul.f32 %v259, %v275
  %279 = vrot.lane.b32.xlu0 %v277, 64
  %v280 = vpop.permute.xlu0 %279
  %v281 = vsel %vm179, %v280, 0
  %283 = vmatprep.subr.mxu0 0.0
  %284 = vmatpush1.msra.mxu0 %v23
  %285 = vmatprep.subr.mxu0 0.0
  %286 = vmatpush1.msra.mxu0 %v24
  %287 = vmatprep.subr.mxu0 0.0
  %288 = vmatpush1.msra.mxu0 %v25
  %289 = vmatprep.subr.mxu0 0.0
  %290 = vmatpush1.msra.mxu0 %v26
  %291 = vmatprep.subr.mxu0 0.0
  %292 = vmatpush1.msra.mxu0 0.0
  %293 = vmatprep.subr.mxu0 0.0
  %294 = vmatpush1.msra.mxu0 0.0
  %295 = vmatprep.subr.mxu0 0.0
  %296 = vmatpush1.msra.mxu0 0.0
  %297 = vmatprep.subr.mxu0 0.0
  %298 = vmatpush1.msra.mxu0 0.0
  %299 = vmatprep.subr.mxu0 0.0
  %300 = vmatpush1.msra.mxu0 0.0
  %301 = vmatprep.subr.mxu0 0.0
  %302 = vmatpush1.msra.mxu0 0.0
  %303 = vmatprep.subr.mxu0 0.0
  %304 = vmatpush1.msra.mxu0 0.0
  %305 = vmatprep.subr.mxu0 0.0
  %306 = vmatpush1.msra.mxu0 0.0
  %307 = vmatprep.subr.mxu0 0.0
  %308 = vmatpush1.msra.mxu0 0.0
  %309 = vmatprep.subr.mxu0 0.0
  %310 = vmatpush1.msra.mxu0 0.0
  %311 = vmatprep.subr.mxu0 0.0
  %312 = vmatpush1.msra.mxu0 0.0
  %313 = vmatprep.subr.mxu0 0.0
  %314 = vmatpush1.msra.mxu0 0.0
  %315 = vmatprep.subr.mxu0 0.0
  %316 = vmatpush1.msra.mxu0 0.0
  %317 = vmatprep.subr.mxu0 0.0
  %318 = vmatpush1.msra.mxu0 0.0
  %319 = vmatprep.subr.mxu0 0.0
  %320 = vmatpush1.msra.mxu0 0.0
  %321 = vmatprep.subr.mxu0 0.0
  %322 = vmatpush1.msra.mxu0 0.0
  %323 = vmatprep.subr.mxu0 0.0
  %324 = vmatpush1.msra.mxu0 0.0
  %325 = vmatprep.subr.mxu0 0.0
  %326 = vmatpush1.msra.mxu0 0.0
  %327 = vmatprep.subr.mxu0 0.0
  %328 = vmatpush1.msra.mxu0 0.0
  %329 = vmatprep.subr.mxu0 0.0
  %330 = vmatpush1.msra.mxu0 0.0
  %331 = vmatprep.subr.mxu0 0.0
  %332 = vmatpush1.msra.mxu0 0.0
  %333 = vmatprep.subr.mxu0 0.0
  %334 = vmatpush1.msra.mxu0 0.0
  %335 = vmatprep.subr.mxu0 0.0
  %336 = vmatpush1.msra.mxu0 0.0
  %337 = vmatprep.subr.mxu0 0.0
  %338 = vmatpush1.msra.mxu0 0.0
  %339 = vmatprep.subr.mxu0 0.0
  %340 = vmatpush1.msra.mxu0 0.0
  %341 = vmatprep.subr.mxu0 0.0
  %342 = vmatpush1.msra.mxu0 0.0
  %343 = vmatprep.subr.mxu0 0.0
  %344 = vmatpush1.msra.mxu0 0.0
  %345 = vmatprep.subr.mxu0 0.0
  %346 = vmatpush1.msra.mxu0 0.0
  %347 = vmatprep.mubr.f32.mxu0 0.0
  %348 = vmatmul.mubr.f32.gmra.mrb[0].mxu0 %v281
  %v349 = vpop.f32.mrb[0].mxu0
  %v350 = vadd.f32 0.0, %v349
  %v351 = vpop.f32.mrb[0].mxu0
  %352 = vdwg.mxu0
  %v353 = vadd.f32 %v156, %v350
  %v354 = vxor.u32 %v353, 2147483648
  %v355 = vmul.f32 %v354, 1.442695
  %v356 = vpow.pop %v355
  %v357 = vadd.f32 %v356, 1.0
  %v358 = vrcp.pop %v357
  %v359 = vmul.f32 1.0, %v358
  %v360 = vtanh.pop %v353
  %v361 = vmul.f32 %v359, %v271
  %363 = vrot.lane.b32.xlu0 %v360, 32
  %v364 = vpop.permute.xlu0 %363
  %v366 = vmul.f32 %v359, %v364
  %368 = vrot.lane.b32.xlu0 %v366, 32
  %v369 = vpop.permute.xlu0 %368
  %v371 = vadd.f32 %v361, %v369
  %v372 = vtanh.pop %v371
  %374 = vrot.lane.b32.xlu0 %v372, 32
  %v375 = vpop.permute.xlu0 %374
  %v377 = vmul.f32 %v359, %v375
  %379 = vrot.lane.b32.xlu0 %v377, 64
  %v380 = vpop.permute.xlu0 %379
  %v381 = vsel %vm179, %v380, 0
  %383 = vmatprep.subr.mxu0 0.0
  %384 = vmatpush1.msra.mxu0 %v31
  %385 = vmatprep.subr.mxu0 0.0
  %386 = vmatpush1.msra.mxu0 %v32
  %387 = vmatprep.subr.mxu0 0.0
  %388 = vmatpush1.msra.mxu0 %v33
  %389 = vmatprep.subr.mxu0 0.0
  %390 = vmatpush1.msra.mxu0 %v34
  %391 = vmatprep.subr.mxu0 0.0
  %392 = vmatpush1.msra.mxu0 0.0
  %393 = vmatprep.subr.mxu0 0.0
  %394 = vmatpush1.msra.mxu0 0.0
  %395 = vmatprep.subr.mxu0 0.0
  %396 = vmatpush1.msra.mxu0 0.0
  %397 = vmatprep.subr.mxu0 0.0
  %398 = vmatpush1.msra.mxu0 0.0
  %399 = vmatprep.subr.mxu0 0.0
  %400 = vmatpush1.msra.mxu0 0.0
  %401 = vmatprep.subr.mxu0 0.0
  %402 = vmatpush1.msra.mxu0 0.0
  %403 = vmatprep.subr.mxu0 0.0
  %404 = vmatpush1.msra.mxu0 0.0
  %405 = vmatprep.subr.mxu0 0.0
  %406 = vmatpush1.msra.mxu0 0.0
  %407 = vmatprep.subr.mxu0 0.0
  %408 = vmatpush1.msra.mxu0 0.0
  %409 = vmatprep.subr.mxu0 0.0
  %410 = vmatpush1.msra.mxu0 0.0
  %411 = vmatprep.subr.mxu0 0.0
  %412 = vmatpush1.msra.mxu0 0.0
  %413 = vmatprep.subr.mxu0 0.0
  %414 = vmatpush1.msra.mxu0 0.0
  %415 = vmatprep.subr.mxu0 0.0
  %416 = vmatpush1.msra.mxu0 0.0
  %417 = vmatprep.subr.mxu0 0.0
  %418 = vmatpush1.msra.mxu0 0.0
  %419 = vmatprep.subr.mxu0 0.0
  %420 = vmatpush1.msra.mxu0 0.0
  %421 = vmatprep.subr.mxu0 0.0
  %422 = vmatpush1.msra.mxu0 0.0
  %423 = vmatprep.subr.mxu0 0.0
  %424 = vmatpush1.msra.mxu0 0.0
  %425 = vmatprep.subr.mxu0 0.0
  %426 = vmatpush1.msra.mxu0 0.0
  %427 = vmatprep.subr.mxu0 0.0
  %428 = vmatpush1.msra.mxu0 0.0
  %429 = vmatprep.subr.mxu0 0.0
  %430 = vmatpush1.msra.mxu0 0.0
  %431 = vmatprep.subr.mxu0 0.0
  %432 = vmatpush1.msra.mxu0 0.0
  %433 = vmatprep.subr.mxu0 0.0
  %434 = vmatpush1.msra.mxu0 0.0
  %435 = vmatprep.subr.mxu0 0.0
  %436 = vmatpush1.msra.mxu0 0.0
  %437 = vmatprep.subr.mxu0 0.0
  %438 = vmatpush1.msra.mxu0 0.0
  %439 = vmatprep.subr.mxu0 0.0
  %440 = vmatpush1.msra.mxu0 0.0
  %441 = vmatprep.subr.mxu0 0.0
  %442 = vmatpush1.msra.mxu0 0.0
  %443 = vmatprep.subr.mxu0 0.0
  %444 = vmatpush1.msra.mxu0 0.0
  %445 = vmatprep.subr.mxu0 0.0
  %446 = vmatpush1.msra.mxu0 0.0
  %447 = vmatprep.mubr.f32.mxu0 0.0
  %448 = vmatmul.mubr.f32.gmra.mrb[0].mxu0 %v381
  %v449 = vpop.f32.mrb[0].mxu0
  %v450 = vadd.f32 0.0, %v449
  %v451 = vpop.f32.mrb[0].mxu0
  %452 = vdwg.mxu0
  %453 = vmatprep.subr.mxu0 0.0
  %454 = vmatpush1.msra.mxu0 %v27
  %455 = vmatprep.subr.mxu0 0.0
  %456 = vmatpush1.msra.mxu0 %v28
  %457 = vmatprep.subr.mxu0 0.0
  %458 = vmatpush1.msra.mxu0 %v29
  %459 = vmatprep.subr.mxu0 0.0
  %460 = vmatpush1.msra.mxu0 %v30
  %461 = vmatprep.subr.mxu0 0.0
  %462 = vmatpush1.msra.mxu0 0.0
  %463 = vmatprep.subr.mxu0 0.0
  %464 = vmatpush1.msra.mxu0 0.0
  %465 = vmatprep.subr.mxu0 0.0
  %466 = vmatpush1.msra.mxu0 0.0
  %467 = vmatprep.subr.mxu0 0.0
  %468 = vmatpush1.msra.mxu0 0.0
  %469 = vmatprep.subr.mxu0 0.0
  %470 = vmatpush1.msra.mxu0 0.0
  %471 = vmatprep.subr.mxu0 0.0
  %472 = vmatpush1.msra.mxu0 0.0
  %473 = vmatprep.subr.mxu0 0.0
  %474 = vmatpush1.msra.mxu0 0.0
  %475 = vmatprep.subr.mxu0 0.0
  %476 = vmatpush1.msra.mxu0 0.0
  %477 = vmatprep.subr.mxu0 0.0
  %478 = vmatpush1.msra.mxu0 0.0
  %479 = vmatprep.subr.mxu0 0.0
  %480 = vmatpush1.msra.mxu0 0.0
  %481 = vmatprep.subr.mxu0 0.0
  %482 = vmatpush1.msra.mxu0 0.0
  %483 = vmatprep.subr.mxu0 0.0
  %484 = vmatpush1.msra.mxu0 0.0
  %485 = vmatprep.subr.mxu0 0.0
  %486 = vmatpush1.msra.mxu0 0.0
  %487 = vmatprep.subr.mxu0 0.0
  %488 = vmatpush1.msra.mxu0 0.0
  %489 = vmatprep.subr.mxu0 0.0
  %490 = vmatpush1.msra.mxu0 0.0
  %491 = vmatprep.subr.mxu0 0.0
  %492 = vmatpush1.msra.mxu0 0.0
  %493 = vmatprep.subr.mxu0 0.0
  %494 = vmatpush1.msra.mxu0 0.0
  %495 = vmatprep.subr.mxu0 0.0
  %496 = vmatpush1.msra.mxu0 0.0
  %497 = vmatprep.subr.mxu0 0.0
  %498 = vmatpush1.msra.mxu0 0.0
  %499 = vmatprep.subr.mxu0 0.0
  %500 = vmatpush1.msra.mxu0 0.0
  %501 = vmatprep.subr.mxu0 0.0
  %502 = vmatpush1.msra.mxu0 0.0
  %503 = vmatprep.subr.mxu0 0.0
  %504 = vmatpush1.msra.mxu0 0.0
  %505 = vmatprep.subr.mxu0 0.0
  %506 = vmatpush1.msra.mxu0 0.0
  %507 = vmatprep.subr.mxu0 0.0
  %508 = vmatpush1.msra.mxu0 0.0
  %509 = vmatprep.subr.mxu0 0.0
  %510 = vmatpush1.msra.mxu0 0.0
  %511 = vmatprep.subr.mxu0 0.0
  %512 = vmatpush1.msra.mxu0 0.0
  %513 = vmatprep.subr.mxu0 0.0
  %514 = vmatpush1.msra.mxu0 0.0
  %515 = vmatprep.subr.mxu0 0.0
  %516 = vmatpush1.msra.mxu0 0.0
  %517 = vmatprep.mubr.f32.mxu0 0.0
  %518 = vmatmul.mubr.f32.gmra.mrb[0].mxu0 %v281
  %v519 = vpop.f32.mrb[0].mxu0
  %v520 = vadd.f32 %v450, %v519
  %v521 = vpop.f32.mrb[0].mxu0
  %522 = vdwg.mxu0
  %523 = vmatprep.subr.mxu0 0.0
  %524 = vmatpush1.msra.mxu0 %v23
  %525 = vmatprep.subr.mxu0 0.0
  %526 = vmatpush1.msra.mxu0 %v24
  %527 = vmatprep.subr.mxu0 0.0
  %528 = vmatpush1.msra.mxu0 %v25
  %529 = vmatprep.subr.mxu0 0.0
  %530 = vmatpush1.msra.mxu0 %v26
  %531 = vmatprep.subr.mxu0 0.0
  %532 = vmatpush1.msra.mxu0 0.0
  %533 = vmatprep.subr.mxu0 0.0
  %534 = vmatpush1.msra.mxu0 0.0
  %535 = vmatprep.subr.mxu0 0.0
  %536 = vmatpush1.msra.mxu0 0.0
  %537 = vmatprep.subr.mxu0 0.0
  %538 = vmatpush1.msra.mxu0 0.0
  %539 = vmatprep.subr.mxu0 0.0
  %540 = vmatpush1.msra.mxu0 0.0
  %541 = vmatprep.subr.mxu0 0.0
  %542 = vmatpush1.msra.mxu0 0.0
  %543 = vmatprep.subr.mxu0 0.0
  %544 = vmatpush1.msra.mxu0 0.0
  %545 = vmatprep.subr.mxu0 0.0
  %546 = vmatpush1.msra.mxu0 0.0
  %547 = vmatprep.subr.mxu0 0.0
  %548 = vmatpush1.msra.mxu0 0.0
  %549 = vmatprep.subr.mxu0 0.0
  %550 = vmatpush1.msra.mxu0 0.0
  %551 = vmatprep.subr.mxu0 0.0
  %552 = vmatpush1.msra.mxu0 0.0
  %553 = vmatprep.subr.mxu0 0.0
  %554 = vmatpush1.msra.mxu0 0.0
  %555 = vmatprep.subr.mxu0 0.0
  %556 = vmatpush1.msra.mxu0 0.0
  %557 = vmatprep.subr.mxu0 0.0
  %558 = vmatpush1.msra.mxu0 0.0
  %559 = vmatprep.subr.mxu0 0.0
  %560 = vmatpush1.msra.mxu0 0.0
  %561 = vmatprep.subr.mxu0 0.0
  %562 = vmatpush1.msra.mxu0 0.0
  %563 = vmatprep.subr.mxu0 0.0
  %564 = vmatpush1.msra.mxu0 0.0
  %565 = vmatprep.subr.mxu0 0.0
  %566 = vmatpush1.msra.mxu0 0.0
  %567 = vmatprep.subr.mxu0 0.0
  %568 = vmatpush1.msra.mxu0 0.0
  %569 = vmatprep.subr.mxu0 0.0
  %570 = vmatpush1.msra.mxu0 0.0
  %571 = vmatprep.subr.mxu0 0.0
  %572 = vmatpush1.msra.mxu0 0.0
  %573 = vmatprep.subr.mxu0 0.0
  %574 = vmatpush1.msra.mxu0 0.0
  %575 = vmatprep.subr.mxu0 0.0
  %576 = vmatpush1.msra.mxu0 0.0
  %577 = vmatprep.subr.mxu0 0.0
  %578 = vmatpush1.msra.mxu0 0.0
  %579 = vmatprep.subr.mxu0 0.0
  %580 = vmatpush1.msra.mxu0 0.0
  %581 = vmatprep.subr.mxu0 0.0
  %582 = vmatpush1.msra.mxu0 0.0
  %583 = vmatprep.subr.mxu0 0.0
  %584 = vmatpush1.msra.mxu0 0.0
  %585 = vmatprep.subr.mxu0 0.0
  %586 = vmatpush1.msra.mxu0 0.0
  %587 = vmatprep.mubr.f32.mxu0 0.0
  %588 = vmatmul.mubr.f32.gmra.mrb[0].mxu0 %v381
  %v589 = vpop.f32.mrb[0].mxu0
  %v590 = vadd.f32 0.0, %v589
  %v591 = vpop.f32.mrb[0].mxu0
  %592 = vdwg.mxu0
  %v593 = vadd.f32 %v161, %v590
  %v594 = vxor.u32 %v593, 2147483648
  %v595 = vmul.f32 %v594, 1.442695
  %v596 = vpow.pop %v595
  %v597 = vadd.f32 %v596, 1.0
  %v598 = vrcp.pop %v597
  %v599 = vmul.f32 1.0, %v598
  %v600 = vtanh.pop %v593
  %v601 = vmul.f32 %v599, %v371
  %603 = vrot.lane.b32.xlu0 %v600, 32
  %v604 = vpop.permute.xlu0 %603
  %v606 = vmul.f32 %v599, %v604
  %608 = vrot.lane.b32.xlu0 %v606, 32
  %v609 = vpop.permute.xlu0 %608
  %v611 = vadd.f32 %v601, %v609
  %v612 = vtanh.pop %v611
  %614 = vrot.lane.b32.xlu0 %v612, 32
  %v615 = vpop.permute.xlu0 %614
  %v617 = vmul.f32 %v599, %v615
  %619 = vrot.lane.b32.xlu0 %v617, 64
  %v620 = vpop.permute.xlu0 %619
  %v621 = vsel %vm179, %v620, 0
  %623 = vmatprep.subr.mxu0 0.0
  %624 = vmatpush1.msra.mxu0 %v35
  %625 = vmatprep.subr.mxu0 0.0
  %626 = vmatpush1.msra.mxu0 %v36
  %627 = vmatprep.subr.mxu0 0.0
  %628 = vmatpush1.msra.mxu0 %v37
  %629 = vmatprep.subr.mxu0 0.0
  %630 = vmatpush1.msra.mxu0 %v38
  %631 = vmatprep.subr.mxu0 0.0
  %632 = vmatpush1.msra.mxu0 0.0
  %633 = vmatprep.subr.mxu0 0.0
  %634 = vmatpush1.msra.mxu0 0.0
  %635 = vmatprep.subr.mxu0 0.0
  %636 = vmatpush1.msra.mxu0 0.0
  %637 = vmatprep.subr.mxu0 0.0
  %638 = vmatpush1.msra.mxu0 0.0
  %639 = vmatprep.subr.mxu0 0.0
  %640 = vmatpush1.msra.mxu0 0.0
  %641 = vmatprep.subr.mxu0 0.0
  %642 = vmatpush1.msra.mxu0 0.0
  %643 = vmatprep.subr.mxu0 0.0
  %644 = vmatpush1.msra.mxu0 0.0
  %645 = vmatprep.subr.mxu0 0.0
  %646 = vmatpush1.msra.mxu0 0.0
  %647 = vmatprep.subr.mxu0 0.0
  %648 = vmatpush1.msra.mxu0 0.0
  %649 = vmatprep.subr.mxu0 0.0
  %650 = vmatpush1.msra.mxu0 0.0
  %651 = vmatprep.subr.mxu0 0.0
  %652 = vmatpush1.msra.mxu0 0.0
  %653 = vmatprep.subr.mxu0 0.0
  %654 = vmatpush1.msra.mxu0 0.0
  %655 = vmatprep.subr.mxu0 0.0
  %656 = vmatpush1.msra.mxu0 0.0
  %657 = vmatprep.subr.mxu0 0.0
  %658 = vmatpush1.msra.mxu0 0.0
  %659 = vmatprep.subr.mxu0 0.0
  %660 = vmatpush1.msra.mxu0 0.0
  %661 = vmatprep.subr.mxu0 0.0
  %662 = vmatpush1.msra.mxu0 0.0
  %663 = vmatprep.subr.mxu0 0.0
  %664 = vmatpush1.msra.mxu0 0.0
  %665 = vmatprep.subr.mxu0 0.0
  %666 = vmatpush1.msra.mxu0 0.0
  %667 = vmatprep.subr.mxu0 0.0
  %668 = vmatpush1.msra.mxu0 0.0
  %669 = vmatprep.subr.mxu0 0.0
  %670 = vmatpush1.msra.mxu0 0.0
  %671 = vmatprep.subr.mxu0 0.0
  %672 = vmatpush1.msra.mxu0 0.0
  %673 = vmatprep.subr.mxu0 0.0
  %674 = vmatpush1.msra.mxu0 0.0
  %675 = vmatprep.subr.mxu0 0.0
  %676 = vmatpush1.msra.mxu0 0.0
  %677 = vmatprep.subr.mxu0 0.0
  %678 = vmatpush1.msra.mxu0 0.0
  %679 = vmatprep.subr.mxu0 0.0
  %680 = vmatpush1.msra.mxu0 0.0
  %681 = vmatprep.subr.mxu0 0.0
  %682 = vmatpush1.msra.mxu0 0.0
  %683 = vmatprep.subr.mxu0 0.0
  %684 = vmatpush1.msra.mxu0 0.0
  %685 = vmatprep.subr.mxu0 0.0
  %686 = vmatpush1.msra.mxu0 0.0
  %687 = vmatprep.mubr.f32.mxu0 0.0
  %688 = vmatmul.mubr.f32.gmra.mrb[0].mxu0 %v621
  %v689 = vpop.f32.mrb[0].mxu0
  %v690 = vadd.f32 0.0, %v689
  %v691 = vpop.f32.mrb[0].mxu0
  %692 = vdwg.mxu0
  %v693 = vadd.f32 %v520, %v690
  %694 = vmatprep.subr.mxu0 0.0
  %695 = vmatpush1.msra.mxu0 %v23
  %696 = vmatprep.subr.mxu0 0.0
  %697 = vmatpush1.msra.mxu0 %v24
  %698 = vmatprep.subr.mxu0 0.0
  %699 = vmatpush1.msra.mxu0 %v25
  %700 = vmatprep.subr.mxu0 0.0
  %701 = vmatpush1.msra.mxu0 %v26
  %702 = vmatprep.subr.mxu0 0.0
  %703 = vmatpush1.msra.mxu0 0.0
  %704 = vmatprep.subr.mxu0 0.0
  %705 = vmatpush1.msra.mxu0 0.0
  %706 = vmatprep.subr.mxu0 0.0
  %707 = vmatpush1.msra.mxu0 0.0
  %708 = vmatprep.subr.mxu0 0.0
  %709 = vmatpush1.msra.mxu0 0.0
  %710 = vmatprep.subr.mxu0 0.0
  %711 = vmatpush1.msra.mxu0 0.0
  %712 = vmatprep.subr.mxu0 0.0
  %713 = vmatpush1.msra.mxu0 0.0
  %714 = vmatprep.subr.mxu0 0.0
  %715 = vmatpush1.msra.mxu0 0.0
  %716 = vmatprep.subr.mxu0 0.0
  %717 = vmatpush1.msra.mxu0 0.0
  %718 = vmatprep.subr.mxu0 0.0
  %719 = vmatpush1.msra.mxu0 0.0
  %720 = vmatprep.subr.mxu0 0.0
  %721 = vmatpush1.msra.mxu0 0.0
  %722 = vmatprep.subr.mxu0 0.0
  %723 = vmatpush1.msra.mxu0 0.0
  %724 = vmatprep.subr.mxu0 0.0
  %725 = vmatpush1.msra.mxu0 0.0
  %726 = vmatprep.subr.mxu0 0.0
  %727 = vmatpush1.msra.mxu0 0.0
  %728 = vmatprep.subr.mxu0 0.0
  %729 = vmatpush1.msra.mxu0 0.0
  %730 = vmatprep.subr.mxu0 0.0
  %731 = vmatpush1.msra.mxu0 0.0
  %732 = vmatprep.subr.mxu0 0.0
  %733 = vmatpush1.msra.mxu0 0.0
  %734 = vmatprep.subr.mxu0 0.0
  %735 = vmatpush1.msra.mxu0 0.0
  %736 = vmatprep.subr.mxu0 0.0
  %737 = vmatpush1.msra.mxu0 0.0
  %738 = vmatprep.subr.mxu0 0.0
  %739 = vmatpush1.msra.mxu0 0.0
  %740 = vmatprep.subr.mxu0 0.0
  %741 = vmatpush1.msra.mxu0 0.0
  %742 = vmatprep.subr.mxu0 0.0
  %743 = vmatpush1.msra.mxu0 0.0
  %744 = vmatprep.subr.mxu0 0.0
  %745 = vmatpush1.msra.mxu0 0.0
  %746 = vmatprep.subr.mxu0 0.0
  %747 = vmatpush1.msra.mxu0 0.0
  %748 = vmatprep.subr.mxu0 0.0
  %749 = vmatpush1.msra.mxu0 0.0
  %750 = vmatprep.subr.mxu0 0.0
  %751 = vmatpush1.msra.mxu0 0.0
  %752 = vmatprep.subr.mxu0 0.0
  %753 = vmatpush1.msra.mxu0 0.0
  %754 = vmatprep.subr.mxu0 0.0
  %755 = vmatpush1.msra.mxu0 0.0
  %756 = vmatprep.subr.mxu0 0.0
  %757 = vmatpush1.msra.mxu0 0.0
  %758 = vmatprep.mubr.f32.mxu0 0.0
  %759 = vmatmul.mubr.f32.gmra.mrb[0].mxu0 %v621
  %v760 = vpop.f32.mrb[0].mxu0
  %v761 = vadd.f32 0.0, %v760
  %v762 = vpop.f32.mrb[0].mxu0
  %763 = vdwg.mxu0
  %v764 = vadd.f32 %v166, %v761
  %v765 = vxor.u32 %v764, 2147483648
  %v766 = vmul.f32 %v765, 1.442695
  %v767 = vpow.pop %v766
  %v768 = vadd.f32 %v767, 1.0
  %v769 = vrcp.pop %v768
  %v770 = vmul.f32 1.0, %v769
  %v771 = vtanh.pop %v764
  %v772 = vmul.f32 %v770, %v611
  %774 = vrot.lane.b32.xlu0 %v771, 32
  %v775 = vpop.permute.xlu0 %774
  %v777 = vmul.f32 %v770, %v775
  %779 = vrot.lane.b32.xlu0 %v777, 32
  %v780 = vpop.permute.xlu0 %779
  %v782 = vadd.f32 %v772, %v780
  %v783 = vtanh.pop %v782
  %785 = vrot.lane.b32.xlu0 %v783, 32
  %v786 = vpop.permute.xlu0 %785
  %v788 = vmul.f32 %v770, %v786
  %790 = vrot.lane.b32.xlu0 %v788, 64
  %v791 = vpop.permute.xlu0 %790
  %v792 = vsel %vm179, %v791, 0
  %794 = vmatprep.subr.mxu0 0.0
  %795 = vmatpush1.msra.mxu0 %v39
  %796 = vmatprep.subr.mxu0 0.0
  %797 = vmatpush1.msra.mxu0 %v40
  %798 = vmatprep.subr.mxu0 0.0
  %799 = vmatpush1.msra.mxu0 %v41
  %800 = vmatprep.subr.mxu0 0.0
  %801 = vmatpush1.msra.mxu0 %v42
  %802 = vmatprep.subr.mxu0 0.0
  %803 = vmatpush1.msra.mxu0 0.0
  %804 = vmatprep.subr.mxu0 0.0
  %805 = vmatpush1.msra.mxu0 0.0
  %806 = vmatprep.subr.mxu0 0.0
  %807 = vmatpush1.msra.mxu0 0.0
  %808 = vmatprep.subr.mxu0 0.0
  %809 = vmatpush1.msra.mxu0 0.0
  %810 = vmatprep.subr.mxu0 0.0
  %811 = vmatpush1.msra.mxu0 0.0
  %812 = vmatprep.subr.mxu0 0.0
  %813 = vmatpush1.msra.mxu0 0.0
  %814 = vmatprep.subr.mxu0 0.0
  %815 = vmatpush1.msra.mxu0 0.0
  %816 = vmatprep.subr.mxu0 0.0
  %817 = vmatpush1.msra.mxu0 0.0
  %818 = vmatprep.subr.mxu0 0.0
  %819 = vmatpush1.msra.mxu0 0.0
  %820 = vmatprep.subr.mxu0 0.0
  %821 = vmatpush1.msra.mxu0 0.0
  %822 = vmatprep.subr.mxu0 0.0
  %823 = vmatpush1.msra.mxu0 0.0
  %824 = vmatprep.subr.mxu0 0.0
  %825 = vmatpush1.msra.mxu0 0.0
  %826 = vmatprep.subr.mxu0 0.0
  %827 = vmatpush1.msra.mxu0 0.0
  %828 = vmatprep.subr.mxu0 0.0
  %829 = vmatpush1.msra.mxu0 0.0
  %830 = vmatprep.subr.mxu0 0.0
  %831 = vmatpush1.msra.mxu0 0.0
  %832 = vmatprep.subr.mxu0 0.0
  %833 = vmatpush1.msra.mxu0 0.0
  %834 = vmatprep.subr.mxu0 0.0
  %835 = vmatpush1.msra.mxu0 0.0
  %836 = vmatprep.subr.mxu0 0.0
  %837 = vmatpush1.msra.mxu0 0.0
  %838 = vmatprep.subr.mxu0 0.0
  %839 = vmatpush1.msra.mxu0 0.0
  %840 = vmatprep.subr.mxu0 0.0
  %841 = vmatpush1.msra.mxu0 0.0
  %842 = vmatprep.subr.mxu0 0.0
  %843 = vmatpush1.msra.mxu0 0.0
  %844 = vmatprep.subr.mxu0 0.0
  %845 = vmatpush1.msra.mxu0 0.0
  %846 = vmatprep.subr.mxu0 0.0
  %847 = vmatpush1.msra.mxu0 0.0
  %848 = vmatprep.subr.mxu0 0.0
  %849 = vmatpush1.msra.mxu0 0.0
  %850 = vmatprep.subr.mxu0 0.0
  %851 = vmatpush1.msra.mxu0 0.0
  %852 = vmatprep.subr.mxu0 0.0
  %853 = vmatpush1.msra.mxu0 0.0
  %854 = vmatprep.subr.mxu0 0.0
  %855 = vmatpush1.msra.mxu0 0.0
  %856 = vmatprep.subr.mxu0 0.0
  %857 = vmatpush1.msra.mxu0 0.0
  %858 = vmatprep.mubr.f32.mxu0 0.0
  %859 = vmatmul.mubr.f32.gmra.mrb[0].mxu0 %v792
  %v860 = vpop.f32.mrb[0].mxu0
  %v861 = vadd.f32 0.0, %v860
  %v862 = vpop.f32.mrb[0].mxu0
  %863 = vdwg.mxu0
  %v864 = vadd.f32 %v693, %v861
  %865 = vmatprep.subr.mxu0 0.0
  %866 = vmatpush1.msra.mxu0 %v23
  %867 = vmatprep.subr.mxu0 0.0
  %868 = vmatpush1.msra.mxu0 %v24
  %869 = vmatprep.subr.mxu0 0.0
  %870 = vmatpush1.msra.mxu0 %v25
  %871 = vmatprep.subr.mxu0 0.0
  %872 = vmatpush1.msra.mxu0 %v26
  %873 = vmatprep.subr.mxu0 0.0
  %874 = vmatpush1.msra.mxu0 0.0
  %875 = vmatprep.subr.mxu0 0.0
  %876 = vmatpush1.msra.mxu0 0.0
  %877 = vmatprep.subr.mxu0 0.0
  %878 = vmatpush1.msra.mxu0 0.0
  %879 = vmatprep.subr.mxu0 0.0
  %880 = vmatpush1.msra.mxu0 0.0
  %881 = vmatprep.subr.mxu0 0.0
  %882 = vmatpush1.msra.mxu0 0.0
  %883 = vmatprep.subr.mxu0 0.0
  %884 = vmatpush1.msra.mxu0 0.0
  %885 = vmatprep.subr.mxu0 0.0
  %886 = vmatpush1.msra.mxu0 0.0
  %887 = vmatprep.subr.mxu0 0.0
  %888 = vmatpush1.msra.mxu0 0.0
  %889 = vmatprep.subr.mxu0 0.0
  %890 = vmatpush1.msra.mxu0 0.0
  %891 = vmatprep.subr.mxu0 0.0
  %892 = vmatpush1.msra.mxu0 0.0
  %893 = vmatprep.subr.mxu0 0.0
  %894 = vmatpush1.msra.mxu0 0.0
  %895 = vmatprep.subr.mxu0 0.0
  %896 = vmatpush1.msra.mxu0 0.0
  %897 = vmatprep.subr.mxu0 0.0
  %898 = vmatpush1.msra.mxu0 0.0
  %899 = vmatprep.subr.mxu0 0.0
  %900 = vmatpush1.msra.mxu0 0.0
  %901 = vmatprep.subr.mxu0 0.0
  %902 = vmatpush1.msra.mxu0 0.0
  %903 = vmatprep.subr.mxu0 0.0
  %904 = vmatpush1.msra.mxu0 0.0
  %905 = vmatprep.subr.mxu0 0.0
  %906 = vmatpush1.msra.mxu0 0.0
  %907 = vmatprep.subr.mxu0 0.0
  %908 = vmatpush1.msra.mxu0 0.0
  %909 = vmatprep.subr.mxu0 0.0
  %910 = vmatpush1.msra.mxu0 0.0
  %911 = vmatprep.subr.mxu0 0.0
  %912 = vmatpush1.msra.mxu0 0.0
  %913 = vmatprep.subr.mxu0 0.0
  %914 = vmatpush1.msra.mxu0 0.0
  %915 = vmatprep.subr.mxu0 0.0
  %916 = vmatpush1.msra.mxu0 0.0
  %917 = vmatprep.subr.mxu0 0.0
  %918 = vmatpush1.msra.mxu0 0.0
  %919 = vmatprep.subr.mxu0 0.0
  %920 = vmatpush1.msra.mxu0 0.0
  %921 = vmatprep.subr.mxu0 0.0
  %922 = vmatpush1.msra.mxu0 0.0
  %923 = vmatprep.subr.mxu0 0.0
  %924 = vmatpush1.msra.mxu0 0.0
  %925 = vmatprep.subr.mxu0 0.0
  %926 = vmatpush1.msra.mxu0 0.0
  %927 = vmatprep.subr.mxu0 0.0
  %928 = vmatpush1.msra.mxu0 0.0
  %929 = vmatprep.mubr.f32.mxu0 0.0
  %930 = vmatmul.mubr.f32.gmra.mrb[0].mxu0 %v792
  %v931 = vpop.f32.mrb[0].mxu0
  %v932 = vadd.f32 0.0, %v931
  %v933 = vpop.f32.mrb[0].mxu0
  %934 = vdwg.mxu0
  %v935 = vadd.f32 %v171, %v932
  %v936 = vxor.u32 %v935, 2147483648
  %v937 = vmul.f32 %v936, 1.442695
  %v938 = vpow.pop %v937
  %v939 = vadd.f32 %v938, 1.0
  %v940 = vrcp.pop %v939
  %v941 = vmul.f32 1.0, %v940
  %v942 = vtanh.pop %v935
  %v943 = vmul.f32 %v941, %v782
  %945 = vrot.lane.b32.xlu0 %v942, 32
  %v946 = vpop.permute.xlu0 %945
  %v948 = vmul.f32 %v941, %v946
  %950 = vrot.lane.b32.xlu0 %v948, 32
  %v951 = vpop.permute.xlu0 %950
  %v953 = vadd.f32 %v943, %v951
  %v954 = vtanh.pop %v953
  %956 = vrot.lane.b32.xlu0 %v954, 32
  %v957 = vpop.permute.xlu0 %956
  %v959 = vmul.f32 %v941, %v957
  %961 = vrot.lane.b32.xlu0 %v959, 64
  %v962 = vpop.permute.xlu0 %961
  %v963 = vsel %vm179, %v962, 0
  %965 = vmatprep.subr.mxu0 0.0
  %966 = vmatpush1.msra.mxu0 %v43
  %967 = vmatprep.subr.mxu0 0.0
  %968 = vmatpush1.msra.mxu0 %v44
  %969 = vmatprep.subr.mxu0 0.0
  %970 = vmatpush1.msra.mxu0 %v45
  %971 = vmatprep.subr.mxu0 0.0
  %972 = vmatpush1.msra.mxu0 %v46
  %973 = vmatprep.subr.mxu0 0.0
  %974 = vmatpush1.msra.mxu0 0.0
  %975 = vmatprep.subr.mxu0 0.0
  %976 = vmatpush1.msra.mxu0 0.0
  %977 = vmatprep.subr.mxu0 0.0
  %978 = vmatpush1.msra.mxu0 0.0
  %979 = vmatprep.subr.mxu0 0.0
  %980 = vmatpush1.msra.mxu0 0.0
  %981 = vmatprep.subr.mxu0 0.0
  %982 = vmatpush1.msra.mxu0 0.0
  %983 = vmatprep.subr.mxu0 0.0
  %984 = vmatpush1.msra.mxu0 0.0
  %985 = vmatprep.subr.mxu0 0.0
  %986 = vmatpush1.msra.mxu0 0.0
  %987 = vmatprep.subr.mxu0 0.0
  %988 = vmatpush1.msra.mxu0 0.0
  %989 = vmatprep.subr.mxu0 0.0
  %990 = vmatpush1.msra.mxu0 0.0
  %991 = vmatprep.subr.mxu0 0.0
  %992 = vmatpush1.msra.mxu0 0.0
  %993 = vmatprep.subr.mxu0 0.0
  %994 = vmatpush1.msra.mxu0 0.0
  %995 = vmatprep.subr.mxu0 0.0
  %996 = vmatpush1.msra.mxu0 0.0
  %997 = vmatprep.subr.mxu0 0.0
  %998 = vmatpush1.msra.mxu0 0.0
  %999 = vmatprep.subr.mxu0 0.0
  %1000 = vmatpush1.msra.mxu0 0.0
  %1001 = vmatprep.subr.mxu0 0.0
  %1002 = vmatpush1.msra.mxu0 0.0
  %1003 = vmatprep.subr.mxu0 0.0
  %1004 = vmatpush1.msra.mxu0 0.0
  %1005 = vmatprep.subr.mxu0 0.0
  %1006 = vmatpush1.msra.mxu0 0.0
  %1007 = vmatprep.subr.mxu0 0.0
  %1008 = vmatpush1.msra.mxu0 0.0
  %1009 = vmatprep.subr.mxu0 0.0
  %1010 = vmatpush1.msra.mxu0 0.0
  %1011 = vmatprep.subr.mxu0 0.0
  %1012 = vmatpush1.msra.mxu0 0.0
  %1013 = vmatprep.subr.mxu0 0.0
  %1014 = vmatpush1.msra.mxu0 0.0
  %1015 = vmatprep.subr.mxu0 0.0
  %1016 = vmatpush1.msra.mxu0 0.0
  %1017 = vmatprep.subr.mxu0 0.0
  %1018 = vmatpush1.msra.mxu0 0.0
  %1019 = vmatprep.subr.mxu0 0.0
  %1020 = vmatpush1.msra.mxu0 0.0
  %1021 = vmatprep.subr.mxu0 0.0
  %1022 = vmatpush1.msra.mxu0 0.0
  %1023 = vmatprep.subr.mxu0 0.0
  %1024 = vmatpush1.msra.mxu0 0.0
  %1025 = vmatprep.subr.mxu0 0.0
  %1026 = vmatpush1.msra.mxu0 0.0
  %1027 = vmatprep.subr.mxu0 0.0
  %1028 = vmatpush1.msra.mxu0 0.0
  %1029 = vmatprep.mubr.f32.mxu0 0.0
  %1030 = vmatmul.mubr.f32.gmra.mrb[0].mxu0 %v963
  %v1031 = vpop.f32.mrb[0].mxu0
  %v1032 = vadd.f32 0.0, %v1031
  %v1033 = vpop.f32.mrb[0].mxu0
  %1034 = vdwg.mxu0
  %v1035 = vadd.f32 %v864, %v1032
  %1036 = vmatprep.subr.mxu0 0.0
  %1037 = vmatpush1.msra.mxu0 %v23
  %1038 = vmatprep.subr.mxu0 0.0
  %1039 = vmatpush1.msra.mxu0 %v24
  %1040 = vmatprep.subr.mxu0 0.0
  %1041 = vmatpush1.msra.mxu0 %v25
  %1042 = vmatprep.subr.mxu0 0.0
  %1043 = vmatpush1.msra.mxu0 %v26
  %1044 = vmatprep.subr.mxu0 0.0
  %1045 = vmatpush1.msra.mxu0 0.0
  %1046 = vmatprep.subr.mxu0 0.0
  %1047 = vmatpush1.msra.mxu0 0.0
  %1048 = vmatprep.subr.mxu0 0.0
  %1049 = vmatpush1.msra.mxu0 0.0
  %1050 = vmatprep.subr.mxu0 0.0
  %1051 = vmatpush1.msra.mxu0 0.0
  %1052 = vmatprep.subr.mxu0 0.0
  %1053 = vmatpush1.msra.mxu0 0.0
  %1054 = vmatprep.subr.mxu0 0.0
  %1055 = vmatpush1.msra.mxu0 0.0
  %1056 = vmatprep.subr.mxu0 0.0
  %1057 = vmatpush1.msra.mxu0 0.0
  %1058 = vmatprep.subr.mxu0 0.0
  %1059 = vmatpush1.msra.mxu0 0.0
  %1060 = vmatprep.subr.mxu0 0.0
  %1061 = vmatpush1.msra.mxu0 0.0
  %1062 = vmatprep.subr.mxu0 0.0
  %1063 = vmatpush1.msra.mxu0 0.0
  %1064 = vmatprep.subr.mxu0 0.0
  %1065 = vmatpush1.msra.mxu0 0.0
  %1066 = vmatprep.subr.mxu0 0.0
  %1067 = vmatpush1.msra.mxu0 0.0
  %1068 = vmatprep.subr.mxu0 0.0
  %1069 = vmatpush1.msra.mxu0 0.0
  %1070 = vmatprep.subr.mxu0 0.0
  %1071 = vmatpush1.msra.mxu0 0.0
  %1072 = vmatprep.subr.mxu0 0.0
  %1073 = vmatpush1.msra.mxu0 0.0
  %1074 = vmatprep.subr.mxu0 0.0
  %1075 = vmatpush1.msra.mxu0 0.0
  %1076 = vmatprep.subr.mxu0 0.0
  %1077 = vmatpush1.msra.mxu0 0.0
  %1078 = vmatprep.subr.mxu0 0.0
  %1079 = vmatpush1.msra.mxu0 0.0
  %1080 = vmatprep.subr.mxu0 0.0
  %1081 = vmatpush1.msra.mxu0 0.0
  %1082 = vmatprep.subr.mxu0 0.0
  %1083 = vmatpush1.msra.mxu0 0.0
  %1084 = vmatprep.subr.mxu0 0.0
  %1085 = vmatpush1.msra.mxu0 0.0
  %1086 = vmatprep.subr.mxu0 0.0
  %1087 = vmatpush1.msra.mxu0 0.0
  %1088 = vmatprep.subr.mxu0 0.0
  %1089 = vmatpush1.msra.mxu0 0.0
  %1090 = vmatprep.subr.mxu0 0.0
  %1091 = vmatpush1.msra.mxu0 0.0
  %1092 = vmatprep.subr.mxu0 0.0
  %1093 = vmatpush1.msra.mxu0 0.0
  %1094 = vmatprep.subr.mxu0 0.0
  %1095 = vmatpush1.msra.mxu0 0.0
  %1096 = vmatprep.subr.mxu0 0.0
  %1097 = vmatpush1.msra.mxu0 0.0
  %1098 = vmatprep.subr.mxu0 0.0
  %1099 = vmatpush1.msra.mxu0 0.0
  %1100 = vmatprep.mubr.f32.mxu0 0.0
  %1101 = vmatmul.mubr.f32.gmra.mrb[0].mxu0 %v963
  %v1102 = vpop.f32.mrb[0].mxu0
  %v1103 = vadd.f32 0.0, %v1102
  %v1104 = vpop.f32.mrb[0].mxu0
  %1105 = vdwg.mxu0
  %v1106 = vadd.f32 %v176, %v1103
  %v1107 = vxor.u32 %v1106, 2147483648
  %v1108 = vmul.f32 %v1107, 1.442695
  %v1109 = vpow.pop %v1108
  %v1110 = vadd.f32 %v1109, 1.0
  %v1111 = vrcp.pop %v1110
  %v1112 = vmul.f32 1.0, %v1111
  %v1113 = vtanh.pop %v1106
  %v1114 = vmul.f32 %v1112, %v953
  %1116 = vrot.lane.b32.xlu0 %v1113, 32
  %v1117 = vpop.permute.xlu0 %1116
  %v1119 = vmul.f32 %v1112, %v1117
  %1121 = vrot.lane.b32.xlu0 %v1119, 32
  %v1122 = vpop.permute.xlu0 %1121
  %v1124 = vadd.f32 %v1114, %v1122
  %v1125 = vtanh.pop %v1124
  %1127 = vrot.lane.b32.xlu0 %v1125, 32
  %v1128 = vpop.permute.xlu0 %1127
  %v1130 = vmul.f32 %v1112, %v1128
  %1132 = vrot.lane.b32.xlu0 %v1130, 64
  %v1133 = vpop.permute.xlu0 %1132
  %v1134 = vsel %vm179, %v1133, 0
  %1136 = vmatprep.subr.mxu0 0.0
  %1137 = vmatpush1.msra.mxu0 %v47
  %1138 = vmatprep.subr.mxu0 0.0
  %1139 = vmatpush1.msra.mxu0 %v48
  %1140 = vmatprep.subr.mxu0 0.0
  %1141 = vmatpush1.msra.mxu0 %v49
  %1142 = vmatprep.subr.mxu0 0.0
  %1143 = vmatpush1.msra.mxu0 %v50
  %1144 = vmatprep.subr.mxu0 0.0
  %1145 = vmatpush1.msra.mxu0 0.0
  %1146 = vmatprep.subr.mxu0 0.0
  %1147 = vmatpush1.msra.mxu0 0.0
  %1148 = vmatprep.subr.mxu0 0.0
  %1149 = vmatpush1.msra.mxu0 0.0
  %1150 = vmatprep.subr.mxu0 0.0
  %1151 = vmatpush1.msra.mxu0 0.0
  %1152 = vmatprep.subr.mxu0 0.0
  %1153 = vmatpush1.msra.mxu0 0.0
  %1154 = vmatprep.subr.mxu0 0.0
  %1155 = vmatpush1.msra.mxu0 0.0
  %1156 = vmatprep.subr.mxu0 0.0
  %1157 = vmatpush1.msra.mxu0 0.0
  %1158 = vmatprep.subr.mxu0 0.0
  %1159 = vmatpush1.msra.mxu0 0.0
  %1160 = vmatprep.subr.mxu0 0.0
  %1161 = vmatpush1.msra.mxu0 0.0
  %1162 = vmatprep.subr.mxu0 0.0
  %1163 = vmatpush1.msra.mxu0 0.0
  %1164 = vmatprep.subr.mxu0 0.0
  %1165 = vmatpush1.msra.mxu0 0.0
  %1166 = vmatprep.subr.mxu0 0.0
  %1167 = vmatpush1.msra.mxu0 0.0
  %1168 = vmatprep.subr.mxu0 0.0
  %1169 = vmatpush1.msra.mxu0 0.0
  %1170 = vmatprep.subr.mxu0 0.0
  %1171 = vmatpush1.msra.mxu0 0.0
  %1172 = vmatprep.subr.mxu0 0.0
  %1173 = vmatpush1.msra.mxu0 0.0
  %1174 = vmatprep.subr.mxu0 0.0
  %1175 = vmatpush1.msra.mxu0 0.0
  %1176 = vmatprep.subr.mxu0 0.0
  %1177 = vmatpush1.msra.mxu0 0.0
  %1178 = vmatprep.subr.mxu0 0.0
  %1179 = vmatpush1.msra.mxu0 0.0
  %1180 = vmatprep.subr.mxu0 0.0
  %1181 = vmatpush1.msra.mxu0 0.0
  %1182 = vmatprep.subr.mxu0 0.0
  %1183 = vmatpush1.msra.mxu0 0.0
  %1184 = vmatprep.subr.mxu0 0.0
  %1185 = vmatpush1.msra.mxu0 0.0
  %1186 = vmatprep.subr.mxu0 0.0
  %1187 = vmatpush1.msra.mxu0 0.0
  %1188 = vmatprep.subr.mxu0 0.0
  %1189 = vmatpush1.msra.mxu0 0.0
  %1190 = vmatprep.subr.mxu0 0.0
  %1191 = vmatpush1.msra.mxu0 0.0
  %1192 = vmatprep.subr.mxu0 0.0
  %1193 = vmatpush1.msra.mxu0 0.0
  %1194 = vmatprep.subr.mxu0 0.0
  %1195 = vmatpush1.msra.mxu0 0.0
  %1196 = vmatprep.subr.mxu0 0.0
  %1197 = vmatpush1.msra.mxu0 0.0
  %1198 = vmatprep.subr.mxu0 0.0
  %1199 = vmatpush1.msra.mxu0 0.0
  %1200 = vmatprep.mubr.f32.mxu0 0.0
  %1201 = vmatmul.mubr.f32.gmra.mrb[0].mxu0 %v1134
  %v1202 = vpop.f32.mrb[0].mxu0
  %v1203 = vadd.f32 0.0, %v1202
  %v1204 = vpop.f32.mrb[0].mxu0
  %1205 = vdwg.mxu0
  %v1206 = vadd.f32 %v1035, %v1203
  %v1207 = vld [vmem:[%s5] sm:$0x1]
  %v1209 = vlaneseq
  %v1210 = vshrl.u32 %v1209, 7
  %v1211 = vsub.s32 0, %v1210
  %v1212 = vrot.slane %v1207, %v1211
  %v1214 = vadd.f32 %v1206, %v1212
  %vm1215 = vcmask 31744
  %1216 = vst.msk [vmem:[%s6] sm:$0xff] %vm1215, %v1214
  // Predicated region
  $region26: #{lstm_forward.1} parent=0 // pred_check
    _
  $region27: #{lstm_forward.1} parent=0 // pred_check_branch
    %1218 = sbr.rel (0) target = $region29
  $region28: #{lstm_forward.1} parent=0 // pred_region
    _
  $region29: #{lstm_forward.1} parent=0 // pred_fallthru
    _
  // Predicated region
  $region30: #{lstm_forward.1} parent=0 // pred_check
    _
  $region31: #{lstm_forward.1} parent=0 // pred_check_branch
    %1220 = sbr.rel (0) target = $region33
  $region32: #{lstm_forward.1} parent=0 // pred_region
    _
  $region33: #{lstm_forward.1} parent=0 // pred_fallthru
    _

</llo_original>
